<compile_context>
chip_gen: v7x
topology: tpu7x:2x2x1
jax: 0.10.0
libtpu: 0.0.40
codegen_flags: <defaults>
</compile_context>

<pallas_src>
from typing import Callable, Dict, List

import jax
import jax.numpy as jnp
from jax import lax
from jax.experimental import pallas as pl
from jax.experimental.pallas import tpu as pltpu

LANES = 128
SUBLANES = 8
INNER_ROWS = 256                       # rows per in-kernel VPU chunk (bounds f32 temps)
DEFAULT_TILE_BUDGET_BYTES = 4 << 20    # per-input DMA tile (2 in x 2 bufs = 16 MiB VMEM)
VMEM_LIMIT_BYTES = 32 << 20            # explicit scoped-VMEM limit (> v5e's 16 MiB default)
DEFAULT_MIN_PALLAS_ELEMS = 1 << 18     # below this, plain XLA wins (launch overhead)


def _row_align(dtype) -> int:
    """Sublane alignment for this dtype (8 for f32, 16 for bf16, 32 for int8)."""
    itemsize = jnp.dtype(dtype).itemsize
    return SUBLANES * max(1, 4 // itemsize)


def _sum_sq_diff_pallas(x2d: jnp.ndarray, y2d: jnp.ndarray,
                        steps: int, tile_rows: int) -> jnp.ndarray:
    """sum((x - y)^2) over rows [0, steps*tile_rows) of two (R,128) slabs -> f32 scalar.

    x2d / y2d may have different (native) dtypes; the upcast happens in-kernel.
    """
    R = x2d.shape[0]
    assert x2d.shape == y2d.shape and x2d.shape[1] == LANES
    assert steps >= 1 and tile_rows % SUBLANES == 0 and steps * tile_rows <= R

    # Unconditional 2-way core split (v7x megacore); odd step counts get one
    # phantom iteration on core 1 that is clamped in the index_map and skipped
    # by pl.when in the body.  Harmless on single-TC v5e/v6e.
    ncores = 2 if steps >= 2 else 1
    inner = -(-steps // ncores)
    n_full = tile_rows // INNER_ROWS
    rem = tile_rows % INNER_ROWS        # multiple of the sublane alignment

    def kernel(x_ref, y_ref, o_ref):
        c = pl.program_id(0)
        i = pl.program_id(1)

        @pl.when(i == 0)
        def _():
            o_ref[...] = jnp.zeros_like(o_ref)

        @pl.when(c * inner + i < steps)          # skip the phantom step (odd split)
        def _():
            def chunk(r0, rows):
                # Native-dtype VMEM reads, f32 upcast on small chunks only.
                xs = x_ref[pl.ds(r0, rows), :].astype(jnp.float32)
                ys = y_ref[pl.ds(r0, rows), :].astype(jnp.float32)
                d = xs - ys
                # Pure-VPU accumulation into an (8,128) slab; no per-chunk XLU reduce.
                return (d * d).reshape(rows // SUBLANES, SUBLANES, LANES).sum(axis=0)

            acc = jnp.zeros((SUBLANES, LANES), jnp.float32)
            if n_full > 0:
                def body(j, a):
                    r0 = pl.multiple_of(j * INNER_ROWS, INNER_ROWS)
                    return a + chunk(r0, INNER_ROWS)
                acc = lax.fori_loop(0, n_full, body, acc)
            if rem > 0:                           # static remainder chunk of the tile
                acc = acc + chunk(n_full * INNER_ROWS, rem)
            o_ref[...] += acc

    def in_map(c, i):
        g = c * inner + i
        return (jnp.minimum(g, steps - 1), 0)     # clamp phantom step -> in-bounds DMA

    partials = pl.pallas_call(
        kernel,
        out_shape=jax.ShapeDtypeStruct((ncores, SUBLANES, LANES), jnp.float32),
        grid_spec=pltpu.PrefetchScalarGridSpec(
            num_scalar_prefetch=0,
            grid=(ncores, inner),
            in_specs=[
                pl.BlockSpec((tile_rows, LANES), in_map),
                pl.BlockSpec((tile_rows, LANES), in_map),
            ],
            # Resident per-core accumulator block (leading dim squeezed).
            out_specs=pl.BlockSpec((None, SUBLANES, LANES), lambda c, i: (c, 0, 0)),
        ),
        compiler_params=pltpu.CompilerParams(
            dimension_semantics=("parallel", "arbitrary"),
            vmem_limit_bytes=VMEM_LIMIT_BYTES,
        ),
    )(x2d, y2d)

    # Single finalize reduction (cross-lane/sublane/core) in plain JAX.
    return jnp.sum(partials)


def mse_loss_pallas(min_pallas_elems: int = DEFAULT_MIN_PALLAS_ELEMS,
                    tile_budget_bytes: int = DEFAULT_TILE_BUDGET_BYTES
                    ) -> Callable[[jnp.ndarray, jnp.ndarray], jnp.ndarray]:
    """Returns a callable computing mean((x - y)^2) via the Pallas kernel.

    (No weight folded in: `Objective` applies its weight, as in the PyTorch spec.)
    """

    def loss(x: jnp.ndarray, y: jnp.ndarray) -> jnp.ndarray:
        assert x.shape == y.shape
        n = x.size

        def xla_mse(a, b):
            d = a.astype(jnp.float32) - b.astype(jnp.float32)
            return jnp.mean(d * d)

        if n < min_pallas_elems:
            return xla_mse(x, y)                 # tiny input: launch overhead dominates

        # Inputs keep their native dtypes (no wrapper promotion); alignment and
        # tile budget are governed by the wider of the two dtypes.
        row_align = max(_row_align(x.dtype), _row_align(y.dtype))
        itemsize = max(jnp.dtype(x.dtype).itemsize, jnp.dtype(y.dtype).itemsize)

        n128 = (n // LANES) * LANES
        R = n128 // LANES
        if R < row_align:
            return xla_mse(x, y)

        # Tile selection: minimal number of tiles <= budget, tiles sized R//steps
        # (rounded to alignment).  No divisibility loop -> tiles never collapse;
        # the small leftover goes to XLA.
        cap_rows = max(row_align,
                       (tile_budget_bytes // (LANES * itemsize)) // row_align * row_align)
        steps_t = -(-R // cap_rows)
        tile_rows = max(row_align, (R // steps_t) // row_align * row_align)
        steps = R // tile_rows
        rows_main = steps * tile_rows

        xf = x.reshape(-1)
        yf = y.reshape(-1)
        if n128 == n:
            x2d, y2d = xf.reshape(R, LANES), yf.reshape(R, LANES)
        else:
            # TODO(synk): for ragged sizes this prefix slice may materialize an
            # HBM copy; an in-kernel masked last tile (scalar-prefetched count +
            # broadcasted_iota mask) would avoid it.
            x2d, y2d = xf[:n128].reshape(R, LANES), yf[:n128].reshape(R, LANES)

        total = _sum_sq_diff_pallas(x2d, y2d, steps, tile_rows)

        if rows_main < R:                        # leftover full-lane rows -> XLA (< 1 tile)
            d = x2d[rows_main:].astype(jnp.float32) - y2d[rows_main:].astype(jnp.float32)
            total = total + jnp.sum(d * d)
        if n128 < n:                             # sub-128 flat tail -> XLA
            d = xf[n128:].astype(jnp.float32) - yf[n128:].astype(jnp.float32)
            total = total + jnp.sum(d * d)
        return total / jnp.float32(n)

    return loss


class Objective:
    """JAX/Pallas port of neuromancer.problem.Objective."""

    def __init__(self, variable_names: List[str],
                 loss: Callable[..., jnp.ndarray],
                 weight: float = 1.0, name: str = 'objective'):
        self.variable_names = variable_names
        self.weight = weight
        self.loss = loss
        self.name = name

    def __call__(self, variables: Dict[str, jnp.ndarray]) -> jnp.ndarray:
        # weight applied here (generic, matches the PyTorch forward); the loss
        # callable itself returns the unweighted 0-dim value.
        return self.weight * self.loss(*[variables[k] for k in self.variable_names])


if __name__ == "__main__":
    key = jax.random.PRNGKey(0)
    ks = jax.random.split(key, 10)
    weight = 0.5

    def ref_mse(x, y):
        d = x.astype(jnp.float32) - y.astype(jnp.float32)
        return jnp.mean(d * d)

    # A) spec demo shape (2,4,16,16): single small tile, static remainder-chunk path.
    xa = jax.random.normal(ks[0], (2, 4, 16, 16), dtype=jnp.float32)
    ya = jax.random.normal(ks[1], (2, 4, 16, 16), dtype=jnp.float32)
    obja = Objective(['x', 'y'], loss=mse_loss_pallas(min_pallas_elems=0),
                     weight=weight, name='mse_objective')
    outa = jax.block_until_ready(obja({'x': xa, 'y': ya}))
    refa = weight * ref_mse(xa, ya)
    assert outa.shape == (), f"expected 0-dim output, got {outa.shape}"
    assert jnp.allclose(outa, refa, rtol=1e-5, atol=1e-6), (outa, refa)

    # B) 256K f32 elements: one 1 MiB tile, in-kernel fori_loop chunking.
    xb = jax.random.normal(ks[2], (2, 8, 128, 128), dtype=jnp.float32)
    yb = jax.random.normal(ks[3], (2, 8, 128, 128), dtype=jnp.float32)
    objb = Objective(['x', 'y'], loss=mse_loss_pallas(), weight=weight)
    outb = jax.block_until_ready(objb({'x': xb, 'y': yb}))
    refb = weight * ref_mse(xb, yb)
    assert jnp.allclose(outb, refb, rtol=1e-5, atol=1e-6), (outb, refb)

    # C) odd step count with a small tile budget: 2-core split + phantom-step clamp.
    xc = jax.random.normal(ks[4], (15, 128, 128), dtype=jnp.float32)
    yc = jax.random.normal(ks[5], (15, 128, 128), dtype=jnp.float32)
    objc = Objective(['x', 'y'],
                     loss=mse_loss_pallas(min_pallas_elems=0, tile_budget_bytes=64 * 1024),
                     weight=weight)
    outc = jax.block_until_ready(objc({'x': xc, 'y': yc}))
    refc = weight * ref_mse(xc, yc)
    assert jnp.allclose(outc, refc, rtol=1e-5, atol=1e-6), (outc, refc)

    # D) ragged element count: kernel on the aligned bulk + XLA row/flat tails.
    xd = jax.random.normal(ks[6], (3, 5, 17, 29), dtype=jnp.float32)
    yd = jax.random.normal(ks[7], (3, 5, 17, 29), dtype=jnp.float32)
    objd = Objective(['x', 'y'],
                     loss=mse_loss_pallas(min_pallas_elems=0, tile_budget_bytes=32 * 1024),
                     weight=weight)
    outd = jax.block_until_ready(objd({'x': xd, 'y': yd}))
    refd = weight * ref_mse(xd, yd)
    assert jnp.allclose(outd, refd, rtol=1e-5, atol=1e-6), (outd, refd)

    # E) mixed dtype (bf16 + f32) DMA'd natively (no wrapper promotion), upcast in-kernel.
    xe = jax.random.normal(ks[8], (2, 8, 128, 128), dtype=jnp.bfloat16)
    ye = jax.random.normal(ks[9], (2, 8, 128, 128), dtype=jnp.float32)
    obje = Objective(['x', 'y'], loss=mse_loss_pallas(), weight=weight)
    oute = jax.block_until_ready(obje({'x': xe, 'y': ye}))
    refe = weight * ref_mse(xe, ye)
    assert jnp.allclose(oute, refe, rtol=1e-4, atol=1e-5), (oute, refe)

    print("KERNEL_OK")
</pallas_src>

<mosaic_0001>
module attributes {stable_mosaic.version = 11 : i64} {
  func.func @kernel(%arg0: i32, %arg1: i32, %arg2: memref<16x128xf32, #tpu.memory_space<vmem>>, %arg3: memref<16x128xf32, #tpu.memory_space<vmem>>, %arg4: memref<1x8x128xf32, #tpu.memory_space<vmem>>) attributes {dimension_semantics = [#tpu.dimension_semantics<parallel>, #tpu.dimension_semantics<arbitrary>], iteration_bounds = array<i64: 1, 1>, scalar_prefetch = 0 : i64, scratch_operands = 0 : i64, tpu.core_type = #tpu.core_type<tc>, window_params = [{transform_indices = @transform_0, window_bounds = array<i64: 16, 128>}, {transform_indices = @transform_1, window_bounds = array<i64: 16, 128>}, {transform_indices = @transform_2, window_bounds = array<i64: 1, 8, 128>}]} {
    %c0_i32 = arith.constant 0 : i32
    %0 = arith.cmpi eq, %arg1, %c0_i32 : i32
    %1 = arith.extui %0 : i1 to i32
    %c0_i32_0 = arith.constant 0 : i32
    %2 = arith.cmpi ne, %1, %c0_i32_0 : i32
    scf.if %2 {
      %cst = arith.constant 0.000000e+00 : f32
      %8 = vector.broadcast %cst : f32 to vector<8x128xf32>
      %c0 = arith.constant 0 : index
      %c0_3 = arith.constant 0 : index
      %c0_4 = arith.constant 0 : index
      %9 = vector.load %arg4[%c0, %c0_3, %c0_4] : memref<1x8x128xf32, #tpu.memory_space<vmem>>, vector<1x8x128xf32>
      %10 = vector.shape_cast %9 : vector<1x8x128xf32> to vector<8x128xf32>
      %11 = vector.shape_cast %8 : vector<8x128xf32> to vector<1x8x128xf32>
      tpu.vector_store %arg4[%c0, %c0_3, %c0_4], %11 {strides = array<i32>} : memref<1x8x128xf32, #tpu.memory_space<vmem>>, vector<1x8x128xf32>,
    } else {
    }
    %c1_i32 = arith.constant 1 : i32
    %3 = arith.muli %arg0, %c1_i32 : i32
    %4 = arith.addi %3, %arg1 : i32
    %c1_i32_1 = arith.constant 1 : i32
    %5 = arith.cmpi slt, %4, %c1_i32_1 : i32
    %6 = arith.extui %5 : i1 to i32
    %c0_i32_2 = arith.constant 0 : i32
    %7 = arith.cmpi ne, %6, %c0_i32_2 : i32
    scf.if %7 {
      %cst = arith.constant 0.000000e+00 : f32
      %8 = vector.broadcast %cst : f32 to vector<8x128xf32>
      %c0 = arith.constant 0 : index
      %c0_3 = arith.constant 0 : index
      %9 = vector.load %arg2[%c0, %c0_3] : memref<16x128xf32, #tpu.memory_space<vmem>>, vector<16x128xf32>
      %c0_4 = arith.constant 0 : index
      %c0_5 = arith.constant 0 : index
      %10 = vector.load %arg3[%c0_4, %c0_5] : memref<16x128xf32, #tpu.memory_space<vmem>>, vector<16x128xf32>
      %11 = arith.subf %9, %10 : vector<16x128xf32>
      %12 = arith.mulf %11, %11 : vector<16x128xf32>
      %13 = vector.shape_cast %12 : vector<16x128xf32> to vector<2x8x128xf32>
      %cst_6 = arith.constant dense<0.000000e+00> : vector<8x128xf32>
      %14 = vector.multi_reduction <add>, %13, %cst_6 [0] : vector<2x8x128xf32> to vector<8x128xf32>
      %15 = arith.addf %8, %14 : vector<8x128xf32>
      %c0_7 = arith.constant 0 : index
      %c0_8 = arith.constant 0 : index
      %c0_9 = arith.constant 0 : index
      %16 = vector.load %arg4[%c0_7, %c0_8, %c0_9] : memref<1x8x128xf32, #tpu.memory_space<vmem>>, vector<1x8x128xf32>
      %17 = vector.shape_cast %16 : vector<1x8x128xf32> to vector<8x128xf32>
      %18 = arith.addf %17, %15 : vector<8x128xf32>
      %c0_10 = arith.constant 0 : index
      %c0_11 = arith.constant 0 : index
      %c0_12 = arith.constant 0 : index
      %19 = vector.load %arg4[%c0_10, %c0_11, %c0_12] : memref<1x8x128xf32, #tpu.memory_space<vmem>>, vector<1x8x128xf32>
      %20 = vector.shape_cast %19 : vector<1x8x128xf32> to vector<8x128xf32>
      %21 = vector.shape_cast %18 : vector<8x128xf32> to vector<1x8x128xf32>
      tpu.vector_store %arg4[%c0_10, %c0_11, %c0_12], %21 {strides = array<i32>} : memref<1x8x128xf32, #tpu.memory_space<vmem>>, vector<1x8x128xf32>,
    } else {
    }
    return
  }
  func.func @transform_0(%arg0: i32, %arg1: i32) -> (i32, i32) {
    %c1_i32 = arith.constant 1 : i32
    %0 = arith.muli %arg0, %c1_i32 : i32
    %1 = arith.addi %0, %arg1 : i32
    %c0_i32 = arith.constant 0 : i32
    %2 = arith.minsi %1, %c0_i32 : i32
    %c0_i32_0 = arith.constant 0 : i32
    %c0_i32_1 = arith.constant 0 : i32
    return %2, %c0_i32_0 : i32, i32
  }
  func.func @transform_1(%arg0: i32, %arg1: i32) -> (i32, i32) {
    %c1_i32 = arith.constant 1 : i32
    %0 = arith.muli %arg0, %c1_i32 : i32
    %1 = arith.addi %0, %arg1 : i32
    %c0_i32 = arith.constant 0 : i32
    %2 = arith.minsi %1, %c0_i32 : i32
    %c0_i32_0 = arith.constant 0 : i32
    %c0_i32_1 = arith.constant 0 : i32
    return %2, %c0_i32_0 : i32, i32
  }
  func.func @transform_2(%arg0: i32, %arg1: i32) -> (i32, i32, i32) {
    %c0_i32 = arith.constant 0 : i32
    %c0_i32_0 = arith.constant 0 : i32
    %c0_i32_1 = arith.constant 0 : i32
    return %arg0, %c0_i32, %c0_i32_0 : i32, i32, i32
  }
}

</mosaic_0001>

<llo_original>
// kernel: tpu_custom_call.1
$region0: #{tpu_custom_call.1}
  #allocation0 [shape = 'u32[]', space=smem, size = 0x4, offset = 0x4, fixed_abs, tag = 'smem constant byte address 0x4 - core index']
  #allocation1 [shape = 'u32[144,128]{1,0:T(1,128)}', space=vmem, size = 0x12000, scoped, tag = 'internal scratch']
  %s0 = inlined_call_operand.hbm [shape: f32[16,128], index: 0, kind: input, shape index: {}]
  %s1 = inlined_call_operand.hbm [shape: f32[16,128], index: 1, kind: input, shape index: {}]
  %s2 = inlined_call_operand.hbm [shape: f32[1,8,128], index: 2, kind: output, shape index: {}]
  %s3 = sld [smem:[#allocation0]]
  $region34: #{tpu_custom_call.1} parent=0
    _
  %s5 = ssub.s32 1, %s3
  %s6 = scalar_select 0, %s5, %s3
  $region1: #{tpu_custom_call.1} parent=0
    #allocation2 [shape = 'u8[8192]{0}', space=vmem, size = 0x2000, scoped, tag = 'input window, operand 0, single buffered']
    #allocation3 [shape = 's32[1]{0}', space=sflag, size = 0x4, scoped, tag = 'scoped memory for tpu_custom_call.1']
    #allocation4 [shape = 's32[1]{0}', space=sflag, size = 0x4, scoped, tag = 'scoped memory for tpu_custom_call.1']
    #allocation5 [shape = 'u8[8192]{0}', space=vmem, size = 0x2000, scoped, tag = 'input window, operand 1, single buffered']
    #allocation6 [shape = 's32[1]{0}', space=sflag, size = 0x4, scoped, tag = 'scoped memory for tpu_custom_call.1']
    #allocation7 [shape = 'u8[4096]{0}', space=vmem, size = 0x1000, scoped, tag = 'output window, operand 0, single buffered']
    %7 = vsyncpa [#allocation3], 0
    %8 = vsyncpa [#allocation6], 0
    %9 = vsyncpa [#allocation4], 0
    // Predicated region
    $region2: #{tpu_custom_call.1} parent=1 // pred_check
      _
    $region3: #{tpu_custom_call.1} parent=1 // pred_check_branch
      %11 = sbr.rel (0) target = $region5
    $region4: #{tpu_custom_call.1} parent=1 // pred_region
      %s12 = sadd.s32 0, 0
      %p13 = scmp.lt.s32.totalorder %s12, 0
      %s14 = scalar_select %p13, %s12, 0
      %s15 = smul.u32 2, %s14
      %s17 = ssub.s32 256, 256
      %18 = vsyncadd [#allocation3], %s17
      %s19 = smul.addr %s15, 128
      %s20 = scalar_lea.hbm %s0, %s19
      %s21 = sshll.u32 [#allocation2], 4
      %s22 = int_to_ptr.vmem [resolvable:$true] %s21
      %27 = dma.hbm_to_vmem [thread:$0]  %s20, 256, %s22, [#allocation3], 128, 128, 8
    $region5: #{tpu_custom_call.1} parent=1 // pred_fallthru
      _
    // Predicated region
    $region6: #{tpu_custom_call.1} parent=1 // pred_check
      _
    $region7: #{tpu_custom_call.1} parent=1 // pred_check_branch
      %29 = sbr.rel (0) target = $region9
    $region8: #{tpu_custom_call.1} parent=1 // pred_region
      %s30 = sadd.s32 0, 0
      %p31 = scmp.lt.s32.totalorder %s30, 0
      %s32 = scalar_select %p31, %s30, 0
      %s33 = smul.u32 2, %s32
      %s35 = ssub.s32 256, 256
      %36 = vsyncadd [#allocation6], %s35
      %s37 = smul.addr %s33, 128
      %s38 = scalar_lea.hbm %s1, %s37
      %s39 = sshll.u32 [#allocation5], 4
      %s40 = int_to_ptr.vmem [resolvable:$true] %s39
      %45 = dma.hbm_to_vmem [thread:$0]  %s38, 256, %s40, [#allocation6], 128, 128, 8
    $region9: #{tpu_custom_call.1} parent=1 // pred_fallthru
      _
    // Predicated region
    $region10: #{tpu_custom_call.1} parent=1 // pred_check
      _
    $region11: #{tpu_custom_call.1} parent=1 // pred_check_branch
      %47 = sbr.rel (0) target = $region13
    $region12: #{tpu_custom_call.1} parent=1 // pred_region
      %48 = dma.done [#allocation3], 256
    $region13: #{tpu_custom_call.1} parent=1 // pred_fallthru
      _
    // Predicated region
    $region14: #{tpu_custom_call.1} parent=1 // pred_check
      _
    $region15: #{tpu_custom_call.1} parent=1 // pred_check_branch
      %50 = sbr.rel (0) target = $region17
    $region16: #{tpu_custom_call.1} parent=1 // pred_region
      %51 = dma.done [#allocation6], 256
    $region17: #{tpu_custom_call.1} parent=1 // pred_fallthru
      _
    %s52 = sadd.s32 0, 0
    %p53 = scmp.lt.s32.totalorder %s52, 0
    %s54 = scalar_select %p53, %s52, 0
    %s55 = smul.u32 2, %s54
    %s56 = sadd.s32 0, 0
    %p57 = scmp.lt.s32.totalorder %s56, 0
    %s58 = scalar_select %p57, %s56, 0
    %s59 = smul.u32 2, %s58
    %p60 = scmp.eq.s32.totalorder 0, 0
    // Predicated region
    $region18: #{tpu_custom_call.1} parent=1 // pred_check
      %p61 = pneg %p60
    $region19: #{tpu_custom_call.1} parent=1 // pred_check_branch
      %63 = sbr.rel (%p61) target = $region21
    $region20: #{tpu_custom_call.1} parent=1 // pred_region
      %64 = vst [vmem:[#allocation7] sm:$0xff] 0.0
    $region21: #{tpu_custom_call.1} parent=1 // pred_fallthru
      _
    %s65 = sadd.s32 0, 0
    %p66 = scmp.lt.s32.totalorder %s65, 1
    // Predicated region
    $region22: #{tpu_custom_call.1} parent=1 // pred_check
      %p67 = pneg %p66
    $region23: #{tpu_custom_call.1} parent=1 // pred_check_branch
      %69 = sbr.rel (%p67) target = $region25
    $region24: #{tpu_custom_call.1} parent=1 // pred_region
      %v70 = vld [vmem:[#allocation2] sm:$0xff]
      %v71 = vld [vmem:[#allocation2 + $0x8] sm:$0xff]
      %v72 = vld [vmem:[#allocation5] sm:$0xff]
      %v73 = vld [vmem:[#allocation5 + $0x8] sm:$0xff]
      %v74 = vsub.f32 %v70, %v72
      %v75 = vsub.f32 %v71, %v73
      %v76 = vmul.f32 %v74, %v74
      %v77 = vmul.f32 %v75, %v75
      %v78 = vadd.f32 %v76, %v77
      %v79 = vadd.f32 %v78, 0.0
      %v80 = vld [vmem:[#allocation7] sm:$0xff]
      %v81 = vadd.f32 %v80, %v79
      %82 = vst [vmem:[#allocation7] sm:$0xff] %v81
    $region25: #{tpu_custom_call.1} parent=1 // pred_fallthru
      _
    // Predicated region
    $region26: #{tpu_custom_call.1} parent=1 // pred_check
      _
    $region27: #{tpu_custom_call.1} parent=1 // pred_check_branch
      %84 = sbr.rel (0) target = $region29
    $region28: #{tpu_custom_call.1} parent=1 // pred_region
      %s86 = ssub.s32 128, 128
      %87 = vsyncadd [#allocation4], %s86
      %s89 = sshll.u32 [#allocation7], 4
      %s90 = int_to_ptr.vmem [resolvable:$true] %s89
      %92 = dma.vmem_to_hbm [thread:$0]  %s90, 128, %s2, [#allocation4]
    $region29: #{tpu_custom_call.1} parent=1 // pred_fallthru
      _
    // Predicated region
    $region30: #{tpu_custom_call.1} parent=1 // pred_check
      _
    $region31: #{tpu_custom_call.1} parent=1 // pred_check_branch
      %94 = sbr.rel (0) target = $region33
    $region32: #{tpu_custom_call.1} parent=1 // pred_region
      %95 = dma.done [#allocation4], 128
    $region33: #{tpu_custom_call.1} parent=1 // pred_fallthru
      _
    %96 = vsyncpa [#allocation3], 1
    %97 = vsyncpa [#allocation6], 1
    %98 = vsyncpa [#allocation4], 1

</llo_original>
